<compile_context>
chip_gen: v7x
topology: tpu7x:2x2x1
jax: 0.10.0
libtpu: 0.0.40
codegen_flags: <defaults>
</compile_context>

<pallas_src>
import math
import jax
import jax.numpy as jnp
from jax.experimental import pallas as pl
from jax.experimental.pallas import tpu as pltpu


def policy_kernel(x_ref, w1_ref, b1_ref, w2_ref, b2_ref, w3_ref, b3_ref, o_ref):
    x = x_ref[...]                                   # (TB, 3)  f32
    w1 = w1_ref[...]                                 # (3, 64)

    # ---- Layer 1 on the VPU: a K=3 matmul is <2% MXU utilization, the
    #      systolic push/drain overhead exceeds the math.  Three broadcast
    #      FMAs per row are cheaper and keep the MXU free for layer 2.
    h1 = (x[:, 0:1] * w1[0:1, :]
          + x[:, 1:2] * w1[1:2, :]
          + x[:, 2:3] * w1[2:3, :]
          + b1_ref[...])                             # (TB, 64)
    h1 = jnp.maximum(h1, 0.0)                        # ReLU

    # ---- Layer 2: 64x64, worth the MXU (f32 accumulation).
    h2 = jnp.dot(h1, w2_ref[...], preferred_element_type=jnp.float32) + b2_ref[...]
    h2 = jnp.maximum(h2, 0.0)                        # ReLU

    # ---- Layer 3: (TB,64) @ (64,4)
    logits = jnp.dot(h2, w3_ref[...], preferred_element_type=jnp.float32) + b3_ref[...]

    # ---- Numerically stable softmax over the last dim (exact divide: the
    #      output tile is tiny, and the approx EUP reciprocal was not accurate
    #      enough for rows to sum to 1 within 1e-3).
    m = jnp.max(logits, axis=-1, keepdims=True)
    e = jnp.exp(logits - m)
    s = jnp.sum(e, axis=-1, keepdims=True)
    o_ref[...] = e / s


def policy_forward(x, params, tile_b=1024):
    """x: (B, 3) float32 -> (B, 4) softmax probabilities."""
    w1, b1, w2, b2, w3, b3 = params
    B = x.shape[0]

    # Batch tile: multiple of 8 (sublane), capped at `tile_b` (VMEM-safe even
    # on v7x's smaller VMEM: a handful of live (TB,64) f32 tensors plus
    # double-buffered x/out tiles stays well under the scoped budget).
    tb = min(tile_b, max(8, ((B + 7) // 8) * 8))
    b_pad = ((B + tb - 1) // tb) * tb
    if b_pad != B:
        # Tail handling: zero-pad; padded rows produce valid (discarded) rows.
        x = jnp.pad(x, ((0, b_pad - B), (0, 0)))

    grid = (b_pad // tb,)

    # Weights/biases: full-array blocks whose index_map is constant, so they
    # are DMA'd once and stay resident in VMEM across all batch tiles.
    resident = lambda shape: pl.BlockSpec(shape, lambda i: (0, 0))

    out = pl.pallas_call(
        policy_kernel,
        out_shape=jax.ShapeDtypeStruct((b_pad, 4), jnp.float32),
        grid=grid,
        in_specs=[
            pl.BlockSpec((tb, 3), lambda i: (i, 0)),   # x: tiled over batch
            resident(w1.shape), resident(b1.shape),
            resident(w2.shape), resident(b2.shape),
            resident(w3.shape), resident(b3.shape),
        ],
        out_specs=pl.BlockSpec((tb, 4), lambda i: (i, 0)),
        compiler_params=pltpu.CompilerParams(
            dimension_semantics=("parallel",),          # batch rows independent
            vmem_limit_bytes=64 * 1024 * 1024,
        ),
    )(x, w1, b1, w2, b2, w3, b3)

    return out[:B]


def policy_reference(x, params):
    """Pure-JAX reference of the same forward pass (for correctness check)."""
    w1, b1, w2, b2, w3, b3 = params
    h1 = jnp.maximum(x @ w1 + b1, 0.0)
    h2 = jnp.maximum(h1 @ w2 + b2, 0.0)
    logits = h2 @ w3 + b3
    return jax.nn.softmax(logits, axis=-1)


def init_params(key):
    """Deterministic PyTorch-Linear-style init (U(-1/sqrt(fan_in), +...))."""
    def linear(key, fan_in, fan_out):
        kw, kb = jax.random.split(key)
        bound = 1.0 / math.sqrt(fan_in)
        w = jax.random.uniform(kw, (fan_in, fan_out), jnp.float32, -bound, bound)
        b = jax.random.uniform(kb, (1, fan_out), jnp.float32, -bound, bound)
        return w, b

    k1, k2, k3 = jax.random.split(key, 3)
    w1, b1 = linear(k1, 3, 64)
    w2, b2 = linear(k2, 64, 64)
    w3, b3 = linear(k3, 64, 4)
    return (w1, b1, w2, b2, w3, b3)


if __name__ == "__main__":
    key = jax.random.PRNGKey(0)
    kx, kp = jax.random.split(key)

    B = 8                                             # single rollout-sized batch
    x = jax.random.normal(kx, (B, 3), dtype=jnp.float32)
    params = init_params(kp)

    out = policy_forward(x, params)
    out = jax.block_until_ready(out)

    # sanity: shape, softmax rows sum to 1, and match the pure-JAX reference.
    ref = policy_reference(x, params)
    assert out.shape == (B, 4)
    assert bool(jnp.allclose(jnp.sum(out, axis=-1), 1.0, atol=1e-5))
    assert bool(jnp.allclose(out, ref, atol=1e-5, rtol=1e-5))

    print("KERNEL_OK")
</pallas_src>

<mosaic_0001>
module attributes {stable_mosaic.version = 11 : i64} {
  func.func @policy_kernel(%arg0: i32, %arg1: memref<8x3xf32, #tpu.memory_space<vmem>>, %arg2: memref<3x64xf32, #tpu.memory_space<vmem>>, %arg3: memref<1x64xf32, #tpu.memory_space<vmem>>, %arg4: memref<64x64xf32, #tpu.memory_space<vmem>>, %arg5: memref<1x64xf32, #tpu.memory_space<vmem>>, %arg6: memref<64x4xf32, #tpu.memory_space<vmem>>, %arg7: memref<1x4xf32, #tpu.memory_space<vmem>>, %arg8: memref<8x4xf32, #tpu.memory_space<vmem>>) attributes {dimension_semantics = [#tpu.dimension_semantics<parallel>], iteration_bounds = array<i64: 1>, scalar_prefetch = 0 : i64, scratch_operands = 0 : i64, tpu.core_type = #tpu.core_type<tc>, window_params = [{transform_indices = @transform_0, window_bounds = array<i64: 8, 3>}, {pipeline_mode = #tpu.pipeline_mode<synchronous>, transform_indices = @transform_1, window_bounds = array<i64: 3, 64>}, {pipeline_mode = #tpu.pipeline_mode<synchronous>, transform_indices = @transform_2, window_bounds = array<i64: 1, 64>}, {pipeline_mode = #tpu.pipeline_mode<synchronous>, transform_indices = @transform_3, window_bounds = array<i64: 64, 64>}, {pipeline_mode = #tpu.pipeline_mode<synchronous>, transform_indices = @transform_4, window_bounds = array<i64: 1, 64>}, {pipeline_mode = #tpu.pipeline_mode<synchronous>, transform_indices = @transform_5, window_bounds = array<i64: 64, 4>}, {pipeline_mode = #tpu.pipeline_mode<synchronous>, transform_indices = @transform_6, window_bounds = array<i64: 1, 4>}, {transform_indices = @transform_7, window_bounds = array<i64: 8, 4>}]} {
    %c0 = arith.constant 0 : index
    %c0_0 = arith.constant 0 : index
    %0 = vector.load %arg1[%c0, %c0_0] : memref<8x3xf32, #tpu.memory_space<vmem>>, vector<8x3xf32>
    %c0_1 = arith.constant 0 : index
    %c0_2 = arith.constant 0 : index
    %1 = vector.load %arg2[%c0_1, %c0_2] : memref<3x64xf32, #tpu.memory_space<vmem>>, vector<3x64xf32>
    %2 = vector.extract_strided_slice %0 {offsets = [0, 0], sizes = [8, 1], strides = [1, 1]} : vector<8x3xf32> to vector<8x1xf32>
    %3 = vector.extract_strided_slice %1 {offsets = [0, 0], sizes = [1, 64], strides = [1, 1]} : vector<3x64xf32> to vector<1x64xf32>
    %4 = vector.broadcast %2 : vector<8x1xf32> to vector<8x64xf32>
    %5 = vector.broadcast %3 : vector<1x64xf32> to vector<8x64xf32>
    %6 = arith.mulf %4, %5 : vector<8x64xf32>
    %7 = vector.extract_strided_slice %0 {offsets = [0, 1], sizes = [8, 1], strides = [1, 1]} : vector<8x3xf32> to vector<8x1xf32>
    %8 = vector.extract_strided_slice %1 {offsets = [1, 0], sizes = [1, 64], strides = [1, 1]} : vector<3x64xf32> to vector<1x64xf32>
    %9 = vector.broadcast %7 : vector<8x1xf32> to vector<8x64xf32>
    %10 = vector.broadcast %8 : vector<1x64xf32> to vector<8x64xf32>
    %11 = arith.mulf %9, %10 : vector<8x64xf32>
    %12 = arith.addf %6, %11 : vector<8x64xf32>
    %13 = vector.extract_strided_slice %0 {offsets = [0, 2], sizes = [8, 1], strides = [1, 1]} : vector<8x3xf32> to vector<8x1xf32>
    %14 = vector.extract_strided_slice %1 {offsets = [2, 0], sizes = [1, 64], strides = [1, 1]} : vector<3x64xf32> to vector<1x64xf32>
    %15 = vector.broadcast %13 : vector<8x1xf32> to vector<8x64xf32>
    %16 = vector.broadcast %14 : vector<1x64xf32> to vector<8x64xf32>
    %17 = arith.mulf %15, %16 : vector<8x64xf32>
    %18 = arith.addf %12, %17 : vector<8x64xf32>
    %c0_3 = arith.constant 0 : index
    %c0_4 = arith.constant 0 : index
    %19 = vector.load %arg3[%c0_3, %c0_4] : memref<1x64xf32, #tpu.memory_space<vmem>>, vector<1x64xf32>
    %20 = vector.broadcast %19 : vector<1x64xf32> to vector<8x64xf32>
    %21 = arith.addf %18, %20 : vector<8x64xf32>
    %cst = arith.constant 0.000000e+00 : f32
    %22 = vector.broadcast %cst : f32 to vector<8x64xf32>
    %23 = arith.maximumf %21, %22 : vector<8x64xf32>
    %c0_5 = arith.constant 0 : index
    %c0_6 = arith.constant 0 : index
    %24 = vector.load %arg4[%c0_5, %c0_6] : memref<64x64xf32, #tpu.memory_space<vmem>>, vector<64x64xf32>
    %cst_7 = arith.constant dense<0.000000e+00> : vector<8x64xf32>
    %25 = tpu.matmul %23, %24, %cst_7 {dimension_numbers = #tpu.dot_dimension_numbers<[1], [0], [0], [1], [0, 0, 1, 1], [], []>} : vector<8x64xf32>, vector<64x64xf32>, vector<8x64xf32> -> vector<8x64xf32>
    %c0_8 = arith.constant 0 : index
    %c0_9 = arith.constant 0 : index
    %26 = vector.load %arg5[%c0_8, %c0_9] : memref<1x64xf32, #tpu.memory_space<vmem>>, vector<1x64xf32>
    %27 = vector.broadcast %26 : vector<1x64xf32> to vector<8x64xf32>
    %28 = arith.addf %25, %27 : vector<8x64xf32>
    %cst_10 = arith.constant 0.000000e+00 : f32
    %29 = vector.broadcast %cst_10 : f32 to vector<8x64xf32>
    %30 = arith.maximumf %28, %29 : vector<8x64xf32>
    %c0_11 = arith.constant 0 : index
    %c0_12 = arith.constant 0 : index
    %31 = vector.load %arg6[%c0_11, %c0_12] : memref<64x4xf32, #tpu.memory_space<vmem>>, vector<64x4xf32>
    %cst_13 = arith.constant dense<0.000000e+00> : vector<8x4xf32>
    %32 = tpu.matmul %30, %31, %cst_13 {dimension_numbers = #tpu.dot_dimension_numbers<[1], [0], [0], [1], [0, 0, 1, 1], [], []>} : vector<8x64xf32>, vector<64x4xf32>, vector<8x4xf32> -> vector<8x4xf32>
    %c0_14 = arith.constant 0 : index
    %c0_15 = arith.constant 0 : index
    %33 = vector.load %arg7[%c0_14, %c0_15] : memref<1x4xf32, #tpu.memory_space<vmem>>, vector<1x4xf32>
    %34 = vector.broadcast %33 : vector<1x4xf32> to vector<8x4xf32>
    %35 = arith.addf %32, %34 : vector<8x4xf32>
    %cst_16 = arith.constant dense<0xFF800000> : vector<8xf32>
    %36 = vector.multi_reduction <maximumf>, %35, %cst_16 [1] : vector<8x4xf32> to vector<8xf32>
    %37 = vector.shape_cast %36 : vector<8xf32> to vector<8x1xf32>
    %38 = vector.broadcast %37 : vector<8x1xf32> to vector<8x4xf32>
    %39 = arith.subf %35, %38 : vector<8x4xf32>
    %40 = math.exp %39 : vector<8x4xf32>
    %cst_17 = arith.constant dense<0.000000e+00> : vector<8xf32>
    %41 = vector.multi_reduction <add>, %40, %cst_17 [1] : vector<8x4xf32> to vector<8xf32>
    %42 = vector.shape_cast %41 : vector<8xf32> to vector<8x1xf32>
    %43 = vector.broadcast %42 : vector<8x1xf32> to vector<8x4xf32>
    %44 = arith.divf %40, %43 : vector<8x4xf32>
    %c0_18 = arith.constant 0 : index
    %c0_19 = arith.constant 0 : index
    %45 = vector.load %arg8[%c0_18, %c0_19] : memref<8x4xf32, #tpu.memory_space<vmem>>, vector<8x4xf32>
    tpu.vector_store %arg8[%c0_18, %c0_19], %44 {strides = array<i32>} : memref<8x4xf32, #tpu.memory_space<vmem>>, vector<8x4xf32>,
    return
  }
  func.func @transform_0(%arg0: i32) -> (i32, i32) {
    %c0_i32 = arith.constant 0 : i32
    %c0_i32_0 = arith.constant 0 : i32
    return %arg0, %c0_i32 : i32, i32
  }
  func.func @transform_1(%arg0: i32) -> (i32, i32) {
    %c0_i32 = arith.constant 0 : i32
    %c0_i32_0 = arith.constant 0 : i32
    %c0_i32_1 = arith.constant 0 : i32
    return %c0_i32, %c0_i32_0 : i32, i32
  }
  func.func @transform_2(%arg0: i32) -> (i32, i32) {
    %c0_i32 = arith.constant 0 : i32
    %c0_i32_0 = arith.constant 0 : i32
    %c0_i32_1 = arith.constant 0 : i32
    return %c0_i32, %c0_i32_0 : i32, i32
  }
  func.func @transform_3(%arg0: i32) -> (i32, i32) {
    %c0_i32 = arith.constant 0 : i32
    %c0_i32_0 = arith.constant 0 : i32
    %c0_i32_1 = arith.constant 0 : i32
    return %c0_i32, %c0_i32_0 : i32, i32
  }
  func.func @transform_4(%arg0: i32) -> (i32, i32) {
    %c0_i32 = arith.constant 0 : i32
    %c0_i32_0 = arith.constant 0 : i32
    %c0_i32_1 = arith.constant 0 : i32
    return %c0_i32, %c0_i32_0 : i32, i32
  }
  func.func @transform_5(%arg0: i32) -> (i32, i32) {
    %c0_i32 = arith.constant 0 : i32
    %c0_i32_0 = arith.constant 0 : i32
    %c0_i32_1 = arith.constant 0 : i32
    return %c0_i32, %c0_i32_0 : i32, i32
  }
  func.func @transform_6(%arg0: i32) -> (i32, i32) {
    %c0_i32 = arith.constant 0 : i32
    %c0_i32_0 = arith.constant 0 : i32
    %c0_i32_1 = arith.constant 0 : i32
    return %c0_i32, %c0_i32_0 : i32, i32
  }
  func.func @transform_7(%arg0: i32) -> (i32, i32) {
    %c0_i32 = arith.constant 0 : i32
    %c0_i32_0 = arith.constant 0 : i32
    return %arg0, %c0_i32 : i32, i32
  }
}

</mosaic_0001>

<llo_original>
// kernel: tpu_custom_call.1
$region0: #{tpu_custom_call.1}
  #allocation0 [shape = 'u32[]', space=smem, size = 0x4, offset = 0x4, fixed_abs, tag = 'smem constant byte address 0x4 - core index']
  #allocation1 [shape = 'u32[144,128]{1,0:T(1,128)}', space=vmem, size = 0x12000, scoped, tag = 'internal scratch']
  %s0 = inlined_call_operand.hbm [shape: f32[8,3], index: 0, kind: input, shape index: {}]
  %s1 = inlined_call_operand.hbm [shape: f32[3,64], index: 1, kind: input, shape index: {}]
  %s2 = inlined_call_operand.hbm [shape: f32[1,64], index: 2, kind: input, shape index: {}]
  %s3 = inlined_call_operand.hbm [shape: f32[64,64], index: 3, kind: input, shape index: {}]
  %s4 = inlined_call_operand.hbm [shape: f32[1,64], index: 4, kind: input, shape index: {}]
  %s5 = inlined_call_operand.hbm [shape: f32[64,4], index: 5, kind: input, shape index: {}]
  %s6 = inlined_call_operand.hbm [shape: f32[1,4], index: 6, kind: input, shape index: {}]
  %s7 = inlined_call_operand.hbm [shape: f32[8,4], index: 7, kind: output, shape index: {}]
  %s8 = sld [smem:[#allocation0]]
  $region66: #{tpu_custom_call.1} parent=0
    _
  %s10 = ssub.s32 1, %s8
  %s11 = scalar_select 0, %s10, %s8
  $region1: #{tpu_custom_call.1} parent=0
    #allocation2 [shape = 'u8[4096]{0}', space=vmem, size = 0x1000, scoped, tag = 'input window, operand 0, single buffered']
    #allocation3 [shape = 's32[1]{0}', space=sflag, size = 0x4, scoped, tag = 'scoped memory for tpu_custom_call.1']
    #allocation4 [shape = 's32[1]{0}', space=sflag, size = 0x4, scoped, tag = 'scoped memory for tpu_custom_call.1']
    #allocation5 [shape = 'u8[2048]{0}', space=vmem, size = 0x800, scoped, tag = 'input window, operand 1, single buffered']
    #allocation6 [shape = 's32[1]{0}', space=sflag, size = 0x4, scoped, tag = 'scoped memory for tpu_custom_call.1']
    #allocation7 [shape = 'u8[512]{0}', space=vmem, size = 0x400, scoped, tag = 'input window, operand 2, single buffered']
    #allocation8 [shape = 'u8[32768]{0}', space=vmem, size = 0x8000, scoped, tag = 'input window, operand 3, single buffered']
    #allocation9 [shape = 's32[1]{0}', space=sflag, size = 0x4, scoped, tag = 'scoped memory for tpu_custom_call.1']
    #allocation10 [shape = 'u8[512]{0}', space=vmem, size = 0x400, scoped, tag = 'input window, operand 4, single buffered']
    #allocation11 [shape = 'u8[32768]{0}', space=vmem, size = 0x8000, scoped, tag = 'input window, operand 5, single buffered']
    #allocation12 [shape = 's32[1]{0}', space=sflag, size = 0x4, scoped, tag = 'scoped memory for tpu_custom_call.1']
    #allocation13 [shape = 'u8[512]{0}', space=vmem, size = 0x400, scoped, tag = 'input window, operand 6, single buffered']
    #allocation14 [shape = 'u8[4096]{0}', space=vmem, size = 0x1000, scoped, tag = 'output window, operand 0, single buffered']
    %12 = vsyncpa [#allocation3], 0
    %13 = vsyncpa [#allocation6], 0
    %14 = vsyncpa [#allocation9], 0
    %15 = vsyncpa [#allocation12], 0
    %16 = vsyncpa [#allocation4], 0
    // Predicated region
    $region2: #{tpu_custom_call.1} parent=1 // pred_check
      _
    $region3: #{tpu_custom_call.1} parent=1 // pred_check_branch
      %18 = sbr.rel (0) target = $region5
    $region4: #{tpu_custom_call.1} parent=1 // pred_region
      %s20 = ssub.s32 128, 128
      %21 = vsyncadd [#allocation3], %s20
      %s23 = sshll.u32 [#allocation2], 4
      %s24 = int_to_ptr.vmem [resolvable:$true] %s23
      %26 = dma.hbm_to_vmem [thread:$0]  %s0, 128, %s24, [#allocation3]
    $region5: #{tpu_custom_call.1} parent=1 // pred_fallthru
      _
    // Predicated region
    $region6: #{tpu_custom_call.1} parent=1 // pred_check
      _
    $region7: #{tpu_custom_call.1} parent=1 // pred_check_branch
      %28 = sbr.rel (0) target = $region9
    $region8: #{tpu_custom_call.1} parent=1 // pred_region
      %s30 = ssub.s32 64, 64
      %31 = vsyncadd [#allocation6], %s30
      %s33 = sshll.u32 [#allocation5], 4
      %s34 = int_to_ptr.vmem [resolvable:$true] %s33
      %36 = dma.hbm_to_vmem [thread:$0]  %s1, 64, %s34, [#allocation6]
    $region9: #{tpu_custom_call.1} parent=1 // pred_fallthru
      _
    // Predicated region
    $region10: #{tpu_custom_call.1} parent=1 // pred_check
      _
    $region11: #{tpu_custom_call.1} parent=1 // pred_check_branch
      %38 = sbr.rel (0) target = $region13
    $region12: #{tpu_custom_call.1} parent=1 // pred_region
      %s40 = ssub.s32 16, 16
      %41 = vsyncadd [#allocation6], %s40
      %s43 = sshll.u32 [#allocation7], 4
      %s44 = int_to_ptr.vmem [resolvable:$true] %s43
      %46 = dma.hbm_to_vmem [thread:$0]  %s2, 16, %s44, [#allocation6]
    $region13: #{tpu_custom_call.1} parent=1 // pred_fallthru
      _
    // Predicated region
    $region14: #{tpu_custom_call.1} parent=1 // pred_check
      _
    $region15: #{tpu_custom_call.1} parent=1 // pred_check_branch
      %48 = sbr.rel (0) target = $region17
    $region16: #{tpu_custom_call.1} parent=1 // pred_region
      %s50 = ssub.s32 1024, 1024
      %51 = vsyncadd [#allocation9], %s50
      %s52 = sshll.u32 [#allocation8], 4
      %s53 = int_to_ptr.vmem [resolvable:$true] %s52
      %58 = dma.hbm_to_vmem [thread:$0]  %s3, 1024, %s53, [#allocation9], 128, 128, 8
    $region17: #{tpu_custom_call.1} parent=1 // pred_fallthru
      _
    // Predicated region
    $region18: #{tpu_custom_call.1} parent=1 // pred_check
      _
    $region19: #{tpu_custom_call.1} parent=1 // pred_check_branch
      %60 = sbr.rel (0) target = $region21
    $region20: #{tpu_custom_call.1} parent=1 // pred_region
      %s62 = ssub.s32 16, 16
      %63 = vsyncadd [#allocation9], %s62
      %s65 = sshll.u32 [#allocation10], 4
      %s66 = int_to_ptr.vmem [resolvable:$true] %s65
      %68 = dma.hbm_to_vmem [thread:$0]  %s4, 16, %s66, [#allocation9]
    $region21: #{tpu_custom_call.1} parent=1 // pred_fallthru
      _
    // Predicated region
    $region22: #{tpu_custom_call.1} parent=1 // pred_check
      _
    $region23: #{tpu_custom_call.1} parent=1 // pred_check_branch
      %70 = sbr.rel (0) target = $region25
    $region24: #{tpu_custom_call.1} parent=1 // pred_region
      %s72 = ssub.s32 1024, 1024
      %73 = vsyncadd [#allocation12], %s72
      %s74 = sshll.u32 [#allocation11], 4
      %s75 = int_to_ptr.vmem [resolvable:$true] %s74
      %80 = dma.hbm_to_vmem [thread:$0]  %s5, 1024, %s75, [#allocation12], 128, 128, 8
    $region25: #{tpu_custom_call.1} parent=1 // pred_fallthru
      _
    // Predicated region
    $region26: #{tpu_custom_call.1} parent=1 // pred_check
      _
    $region27: #{tpu_custom_call.1} parent=1 // pred_check_branch
      %82 = sbr.rel (0) target = $region29
    $region28: #{tpu_custom_call.1} parent=1 // pred_region
      %s84 = ssub.s32 16, 16
      %85 = vsyncadd [#allocation12], %s84
      %s87 = sshll.u32 [#allocation13], 4
      %s88 = int_to_ptr.vmem [resolvable:$true] %s87
      %90 = dma.hbm_to_vmem [thread:$0]  %s6, 16, %s88, [#allocation12]
    $region29: #{tpu_custom_call.1} parent=1 // pred_fallthru
      _
    // Predicated region
    $region30: #{tpu_custom_call.1} parent=1 // pred_check
      _
    $region31: #{tpu_custom_call.1} parent=1 // pred_check_branch
      %92 = sbr.rel (0) target = $region33
    $region32: #{tpu_custom_call.1} parent=1 // pred_region
      %93 = dma.done [#allocation3], 128
    $region33: #{tpu_custom_call.1} parent=1 // pred_fallthru
      _
    // Predicated region
    $region34: #{tpu_custom_call.1} parent=1 // pred_check
      _
    $region35: #{tpu_custom_call.1} parent=1 // pred_check_branch
      %95 = sbr.rel (0) target = $region37
    $region36: #{tpu_custom_call.1} parent=1 // pred_region
      %96 = dma.done [#allocation6], 64
    $region37: #{tpu_custom_call.1} parent=1 // pred_fallthru
      _
    // Predicated region
    $region38: #{tpu_custom_call.1} parent=1 // pred_check
      _
    $region39: #{tpu_custom_call.1} parent=1 // pred_check_branch
      %98 = sbr.rel (0) target = $region41
    $region40: #{tpu_custom_call.1} parent=1 // pred_region
      %99 = dma.done [#allocation6], 16
    $region41: #{tpu_custom_call.1} parent=1 // pred_fallthru
      _
    // Predicated region
    $region42: #{tpu_custom_call.1} parent=1 // pred_check
      _
    $region43: #{tpu_custom_call.1} parent=1 // pred_check_branch
      %101 = sbr.rel (0) target = $region45
    $region44: #{tpu_custom_call.1} parent=1 // pred_region
      %102 = dma.done [#allocation9], 1024
    $region45: #{tpu_custom_call.1} parent=1 // pred_fallthru
      _
    // Predicated region
    $region46: #{tpu_custom_call.1} parent=1 // pred_check
      _
    $region47: #{tpu_custom_call.1} parent=1 // pred_check_branch
      %104 = sbr.rel (0) target = $region49
    $region48: #{tpu_custom_call.1} parent=1 // pred_region
      %105 = dma.done [#allocation9], 16
    $region49: #{tpu_custom_call.1} parent=1 // pred_fallthru
      _
    // Predicated region
    $region50: #{tpu_custom_call.1} parent=1 // pred_check
      _
    $region51: #{tpu_custom_call.1} parent=1 // pred_check_branch
      %107 = sbr.rel (0) target = $region53
    $region52: #{tpu_custom_call.1} parent=1 // pred_region
      %108 = dma.done [#allocation12], 1024
    $region53: #{tpu_custom_call.1} parent=1 // pred_fallthru
      _
    // Predicated region
    $region54: #{tpu_custom_call.1} parent=1 // pred_check
      _
    $region55: #{tpu_custom_call.1} parent=1 // pred_check_branch
      %110 = sbr.rel (0) target = $region57
    $region56: #{tpu_custom_call.1} parent=1 // pred_region
      %111 = dma.done [#allocation12], 16
    $region57: #{tpu_custom_call.1} parent=1 // pred_fallthru
      _
    %v112 = vld [vmem:[#allocation2] sm:$0xff]
    %v113 = vld [vmem:[#allocation5] sm:$0x7]
    %115 = vset.pattern.permute.xlu0 0
    %116 = vperm.xlu0 %115, %v112
    %v117 = vpop.permute.xlu0 %116
    %v119 = vlaneseq
    %v120 = vshrl.u32 %v119, 7
    %v121 = vsub.s32 0, %v120
    %v122 = vrot.slane %v113, %v121
    %v123 = vmul.f32 %v117, %v122
    %124 = vset.pattern.permute.xlu0 1
    %125 = vperm.xlu0 %124, %v112
    %v126 = vpop.permute.xlu0 %125
    %v128 = vlaneseq
    %v129 = vshrl.u32 %v128, 7
    %v130 = vsub.s32 1, %v129
    %v131 = vrot.slane %v113, %v130
    %v132 = vmul.f32 %v126, %v131
    %v133 = vadd.f32 %v123, %v132
    %134 = vset.pattern.permute.xlu0 2
    %135 = vperm.xlu0 %134, %v112
    %v136 = vpop.permute.xlu0 %135
    %v138 = vlaneseq
    %v139 = vshrl.u32 %v138, 7
    %v140 = vsub.s32 2, %v139
    %v141 = vrot.slane %v113, %v140
    %v142 = vmul.f32 %v136, %v141
    %v143 = vadd.f32 %v133, %v142
    %v144 = vld [vmem:[#allocation7] sm:$0x1]
    %v146 = vlaneseq
    %v147 = vshrl.u32 %v146, 7
    %v148 = vsub.s32 0, %v147
    %v149 = vrot.slane %v144, %v148
    %v151 = vadd.f32 %v143, %v149
    %v152 = vmax.f32 %v151, 0.0
    %v153 = vld [vmem:[#allocation8] sm:$0xff]
    %v154 = vld [vmem:[#allocation8 + $0x8] sm:$0xff]
    %v155 = vld [vmem:[#allocation8 + $0x10] sm:$0xff]
    %v156 = vld [vmem:[#allocation8 + $0x18] sm:$0xff]
    %v157 = vld [vmem:[#allocation8 + $0x20] sm:$0xff]
    %v158 = vld [vmem:[#allocation8 + $0x28] sm:$0xff]
    %v159 = vld [vmem:[#allocation8 + $0x30] sm:$0xff]
    %v160 = vld [vmem:[#allocation8 + $0x38] sm:$0xff]
    %v161 = vld [vmem:[#allocation10] sm:$0x1]
    %v163 = vlaneseq
    %v164 = vshrl.u32 %v163, 7
    %v165 = vsub.s32 0, %v164
    %v166 = vrot.slane %v161, %v165
    %vm168 = vcmask 523264
    %v170 = vsel %vm168, %v152, 0
    %172 = vmatprep.subr.mxu0 0.0
    %173 = vmatpush1.msra.mxu0 %v153
    %174 = vmatprep.subr.mxu0 0.0
    %175 = vmatpush1.msra.mxu0 %v154
    %176 = vmatprep.subr.mxu0 0.0
    %177 = vmatpush1.msra.mxu0 %v155
    %178 = vmatprep.subr.mxu0 0.0
    %179 = vmatpush1.msra.mxu0 %v156
    %180 = vmatprep.subr.mxu0 0.0
    %181 = vmatpush1.msra.mxu0 %v157
    %182 = vmatprep.subr.mxu0 0.0
    %183 = vmatpush1.msra.mxu0 %v158
    %184 = vmatprep.subr.mxu0 0.0
    %185 = vmatpush1.msra.mxu0 %v159
    %186 = vmatprep.subr.mxu0 0.0
    %187 = vmatpush1.msra.mxu0 %v160
    %188 = vmatprep.subr.mxu0 0.0
    %189 = vmatpush1.msra.mxu0 0.0
    %190 = vmatprep.subr.mxu0 0.0
    %191 = vmatpush1.msra.mxu0 0.0
    %192 = vmatprep.subr.mxu0 0.0
    %193 = vmatpush1.msra.mxu0 0.0
    %194 = vmatprep.subr.mxu0 0.0
    %195 = vmatpush1.msra.mxu0 0.0
    %196 = vmatprep.subr.mxu0 0.0
    %197 = vmatpush1.msra.mxu0 0.0
    %198 = vmatprep.subr.mxu0 0.0
    %199 = vmatpush1.msra.mxu0 0.0
    %200 = vmatprep.subr.mxu0 0.0
    %201 = vmatpush1.msra.mxu0 0.0
    %202 = vmatprep.subr.mxu0 0.0
    %203 = vmatpush1.msra.mxu0 0.0
    %204 = vmatprep.subr.mxu0 0.0
    %205 = vmatpush1.msra.mxu0 0.0
    %206 = vmatprep.subr.mxu0 0.0
    %207 = vmatpush1.msra.mxu0 0.0
    %208 = vmatprep.subr.mxu0 0.0
    %209 = vmatpush1.msra.mxu0 0.0
    %210 = vmatprep.subr.mxu0 0.0
    %211 = vmatpush1.msra.mxu0 0.0
    %212 = vmatprep.subr.mxu0 0.0
    %213 = vmatpush1.msra.mxu0 0.0
    %214 = vmatprep.subr.mxu0 0.0
    %215 = vmatpush1.msra.mxu0 0.0
    %216 = vmatprep.subr.mxu0 0.0
    %217 = vmatpush1.msra.mxu0 0.0
    %218 = vmatprep.subr.mxu0 0.0
    %219 = vmatpush1.msra.mxu0 0.0
    %220 = vmatprep.subr.mxu0 0.0
    %221 = vmatpush1.msra.mxu0 0.0
    %222 = vmatprep.subr.mxu0 0.0
    %223 = vmatpush1.msra.mxu0 0.0
    %224 = vmatprep.subr.mxu0 0.0
    %225 = vmatpush1.msra.mxu0 0.0
    %226 = vmatprep.subr.mxu0 0.0
    %227 = vmatpush1.msra.mxu0 0.0
    %228 = vmatprep.subr.mxu0 0.0
    %229 = vmatpush1.msra.mxu0 0.0
    %230 = vmatprep.subr.mxu0 0.0
    %231 = vmatpush1.msra.mxu0 0.0
    %232 = vmatprep.subr.mxu0 0.0
    %233 = vmatpush1.msra.mxu0 0.0
    %234 = vmatprep.subr.mxu0 0.0
    %235 = vmatpush1.msra.mxu0 0.0
    %236 = vmatprep.mubr.f32.mxu0 0.0
    %237 = vmatmul.mubr.f32.gmra.mrb[0].mxu0 %v170
    %v238 = vpop.f32.mrb[0].mxu0
    %v239 = vadd.f32 %v166, %v238
    %v240 = vpop.f32.mrb[0].mxu0
    %241 = vdwg.mxu0
    %v242 = vmax.f32 %v239, 0.0
    %v243 = vld [vmem:[#allocation11] sm:$0xff]
    %v244 = vld [vmem:[#allocation11 + $0x8] sm:$0xff]
    %v245 = vld [vmem:[#allocation11 + $0x10] sm:$0xff]
    %v246 = vld [vmem:[#allocation11 + $0x18] sm:$0xff]
    %v247 = vld [vmem:[#allocation11 + $0x20] sm:$0xff]
    %v248 = vld [vmem:[#allocation11 + $0x28] sm:$0xff]
    %v249 = vld [vmem:[#allocation11 + $0x30] sm:$0xff]
    %v250 = vld [vmem:[#allocation11 + $0x38] sm:$0xff]
    %v251 = vld [vmem:[#allocation13] sm:$0x1]
    %v253 = vlaneseq
    %v254 = vshrl.u32 %v253, 7
    %v255 = vsub.s32 0, %v254
    %v256 = vrot.slane %v251, %v255
    %v259 = vsel %vm168, %v242, 0
    %261 = vmatprep.subr.mxu0 0.0
    %262 = vmatpush1.msra.mxu0 %v243
    %263 = vmatprep.subr.mxu0 0.0
    %264 = vmatpush1.msra.mxu0 %v244
    %265 = vmatprep.subr.mxu0 0.0
    %266 = vmatpush1.msra.mxu0 %v245
    %267 = vmatprep.subr.mxu0 0.0
    %268 = vmatpush1.msra.mxu0 %v246
    %269 = vmatprep.subr.mxu0 0.0
    %270 = vmatpush1.msra.mxu0 %v247
    %271 = vmatprep.subr.mxu0 0.0
    %272 = vmatpush1.msra.mxu0 %v248
    %273 = vmatprep.subr.mxu0 0.0
    %274 = vmatpush1.msra.mxu0 %v249
    %275 = vmatprep.subr.mxu0 0.0
    %276 = vmatpush1.msra.mxu0 %v250
    %277 = vmatprep.subr.mxu0 0.0
    %278 = vmatpush1.msra.mxu0 0.0
    %279 = vmatprep.subr.mxu0 0.0
    %280 = vmatpush1.msra.mxu0 0.0
    %281 = vmatprep.subr.mxu0 0.0
    %282 = vmatpush1.msra.mxu0 0.0
    %283 = vmatprep.subr.mxu0 0.0
    %284 = vmatpush1.msra.mxu0 0.0
    %285 = vmatprep.subr.mxu0 0.0
    %286 = vmatpush1.msra.mxu0 0.0
    %287 = vmatprep.subr.mxu0 0.0
    %288 = vmatpush1.msra.mxu0 0.0
    %289 = vmatprep.subr.mxu0 0.0
    %290 = vmatpush1.msra.mxu0 0.0
    %291 = vmatprep.subr.mxu0 0.0
    %292 = vmatpush1.msra.mxu0 0.0
    %293 = vmatprep.subr.mxu0 0.0
    %294 = vmatpush1.msra.mxu0 0.0
    %295 = vmatprep.subr.mxu0 0.0
    %296 = vmatpush1.msra.mxu0 0.0
    %297 = vmatprep.subr.mxu0 0.0
    %298 = vmatpush1.msra.mxu0 0.0
    %299 = vmatprep.subr.mxu0 0.0
    %300 = vmatpush1.msra.mxu0 0.0
    %301 = vmatprep.subr.mxu0 0.0
    %302 = vmatpush1.msra.mxu0 0.0
    %303 = vmatprep.subr.mxu0 0.0
    %304 = vmatpush1.msra.mxu0 0.0
    %305 = vmatprep.subr.mxu0 0.0
    %306 = vmatpush1.msra.mxu0 0.0
    %307 = vmatprep.subr.mxu0 0.0
    %308 = vmatpush1.msra.mxu0 0.0
    %309 = vmatprep.subr.mxu0 0.0
    %310 = vmatpush1.msra.mxu0 0.0
    %311 = vmatprep.subr.mxu0 0.0
    %312 = vmatpush1.msra.mxu0 0.0
    %313 = vmatprep.subr.mxu0 0.0
    %314 = vmatpush1.msra.mxu0 0.0
    %315 = vmatprep.subr.mxu0 0.0
    %316 = vmatpush1.msra.mxu0 0.0
    %317 = vmatprep.subr.mxu0 0.0
    %318 = vmatpush1.msra.mxu0 0.0
    %319 = vmatprep.subr.mxu0 0.0
    %320 = vmatpush1.msra.mxu0 0.0
    %321 = vmatprep.subr.mxu0 0.0
    %322 = vmatpush1.msra.mxu0 0.0
    %323 = vmatprep.subr.mxu0 0.0
    %324 = vmatpush1.msra.mxu0 0.0
    %325 = vmatprep.mubr.f32.mxu0 0.0
    %326 = vmatmul.mubr.f32.gmra.mrb[0].mxu0 %v259
    %v327 = vpop.f32.mrb[0].mxu0
    %v328 = vadd.f32 %v256, %v327
    %v329 = vpop.f32.mrb[0].mxu0
    %330 = vdwg.mxu0
    %vm331 = vcmask 31744
    %v332 = vsel %vm331, %v328, -inf
    %333 = vmax.xlane.f32.xlu0 %v332
    %v334 = vpop.xlane.xlu0 %333
    %v335 = vsub.f32 %v328, %v334
    %v336 = vmul.f32 %v335, 1.442695
    %v337 = vpow.pop %v336
    %v338 = vsel %vm331, %v337, 0.0
    %339 = vadd.xlane.f32.xlu0 %v338
    %v340 = vpop.xlane.xlu0 %339
    %v341 = vrcp.pop %v340
    %v342 = vmul.f32 %v337, %v341
    %343 = vst.msk [vmem:[#allocation14] sm:$0xff] %vm331, %v342
    // Predicated region
    $region58: #{tpu_custom_call.1} parent=1 // pred_check
      _
    $region59: #{tpu_custom_call.1} parent=1 // pred_check_branch
      %345 = sbr.rel (0) target = $region61
    $region60: #{tpu_custom_call.1} parent=1 // pred_region
      %s347 = ssub.s32 128, 128
      %348 = vsyncadd [#allocation4], %s347
      %s350 = sshll.u32 [#allocation14], 4
      %s351 = int_to_ptr.vmem [resolvable:$true] %s350
      %353 = dma.vmem_to_hbm [thread:$0]  %s351, 128, %s7, [#allocation4]
    $region61: #{tpu_custom_call.1} parent=1 // pred_fallthru
      _
    // Predicated region
    $region62: #{tpu_custom_call.1} parent=1 // pred_check
      _
    $region63: #{tpu_custom_call.1} parent=1 // pred_check_branch
      %355 = sbr.rel (0) target = $region65
    $region64: #{tpu_custom_call.1} parent=1 // pred_region
      %356 = dma.done [#allocation4], 128
    $region65: #{tpu_custom_call.1} parent=1 // pred_fallthru
      _
    %357 = vsyncpa [#allocation3], 1
    %358 = vsyncpa [#allocation6], 1
    %359 = vsyncpa [#allocation9], 1
    %360 = vsyncpa [#allocation12], 1
    %361 = vsyncpa [#allocation4], 1

</llo_original>
